<compile_context>
chip_gen: v5e
topology: v5e:2x2
jax: 0.10.0
libtpu: 0.0.40
codegen_flags: <defaults>
</compile_context>

<pallas_src>
import math

import numpy as np

import jax
import jax.numpy as jnp
from jax.experimental import pallas as pl
from jax.experimental.pallas import tpu as pltpu


# -----------------------------------------------------------------------------
# Parameter / buffer setup (plain JAX glue — mirrors the module __init__)
# -----------------------------------------------------------------------------
def make_sincos_pe(d_model: int, max_len: int = 250, dtype=jnp.float32):
    """Build the (max_len, 1, d_model) sinusoidal positional-encoding buffer."""
    position = jnp.arange(max_len, dtype=jnp.float32)[:, None]                  # (L, 1)
    div_term = jnp.exp(
        jnp.arange(0, d_model, 2, dtype=jnp.float32) * (-math.log(10000.0) / d_model)
    )                                                                            # (D/2,)
    pe = jnp.zeros((max_len, d_model), dtype=jnp.float32)
    pe = pe.at[:, 0::2].set(jnp.sin(position * div_term))
    pe = pe.at[:, 1::2].set(jnp.cos(position * div_term))
    return pe[:, None, :].astype(dtype)                                          # (L, 1, D)


def prepare_pe_rows(pe, batch: int):
    """One-time (init) prep: tile the PE buffer over batch -> (max_len, batch*d_model).

    With x flattened to (S, B*D), column c = b*D + d needs pe[:, c % D], which is
    exactly jnp.tile(pe_2d, (1, B)).  Doing this once at init keeps the kernel's
    blocks lane-dense 2-D slabs (no (TS,1,D) sublane-padded PE tiles).
    """
    if pe.ndim == 3:
        pe = pe[:, 0, :]                                                         # (L, D)
    return jnp.tile(pe, (1, batch))                                              # (L, B*D)


# -----------------------------------------------------------------------------
# Pallas kernels
# -----------------------------------------------------------------------------
def _add_pe_kernel(x_ref, pe_ref, o_ref):
    # Eval mode (dropout = identity): y = x + pe, all blocks (TS, B*D).
    o_ref[...] = (x_ref[...] + pe_ref[...]).astype(o_ref.dtype)


def _make_dropout_prng_kernel(threshold: int, scale: float):
    """Training fast path: dropout bits generated on-chip (no bits stream).

    threshold = uint32((1 - p) * 2^32), scale = 1/(1 - p); both are numpy
    scalars so they become jaxpr literals (no captured constants).
    """
    thr = np.uint32(threshold)
    sc = np.float32(scale)

    def kernel(seed_ref, x_ref, pe_ref, o_ref):
        # Independent stream per sequence tile: mix caller seed with grid pos.
        pltpu.prng_seed(seed_ref[0], pl.program_id(0))
        bits = pltpu.prng_random_bits(x_ref.shape)
        if bits.dtype != jnp.uint32:
            bits = pltpu.bitcast(bits, jnp.uint32)
        y = x_ref[...].astype(jnp.float32) + pe_ref[...].astype(jnp.float32)
        keep = bits < thr
        o_ref[...] = jnp.where(keep, y * sc, 0.0).astype(o_ref.dtype)

    return kernel


def _make_dropout_bits_kernel(threshold: int, scale: float):
    """Training portable path: pre-drawn uint32 bits streamed as an input."""
    thr = np.uint32(threshold)
    sc = np.float32(scale)

    def kernel(x_ref, pe_ref, bits_ref, o_ref):
        y = x_ref[...].astype(jnp.float32) + pe_ref[...].astype(jnp.float32)
        keep = bits_ref[...] < thr
        o_ref[...] = jnp.where(keep, y * sc, 0.0).astype(o_ref.dtype)

    return kernel


# -----------------------------------------------------------------------------
# Wrapper (forward pass)
# -----------------------------------------------------------------------------
def _pick_seq_tile(S: int, row_bytes: int, target_bytes: int = 4 * 1024 * 1024) -> int:
    """Sequence tile so one (TS, B*D) block is ~target_bytes, with >=2 grid steps
    when possible (v7x megacore) and TS a multiple of 8 (sublane granularity)."""
    ts = max(1, target_bytes // max(row_bytes, 1))
    if S > 8:
        ts = min(ts, pl.cdiv(S, 2))       # at least 2 grid steps -> both v7x cores get work
    if ts < S:
        ts = max(8, (ts // 8) * 8)        # sublane-aligned unless covering the full axis
    return int(min(ts, S))


def positional_encoding_sincos(x, pe_rows, *, p: float = 0.1, training: bool = False,
                               rng_key=None, use_inkernel_prng: bool = True):
    """Forward pass: dropout(x + pe[:S]).

    x:        (S, B, D)
    pe_rows:  (max_len, B*D) buffer from prepare_pe_rows (preferred, built once
              at init); the raw (max_len, 1, D) / (max_len, D) buffer is also
              accepted and tiled on the fly.
    """
    S, B, D = x.shape
    N = B * D

    if pe_rows.ndim == 3 or pe_rows.shape[-1] != N:
        # Fallback; prefer calling prepare_pe_rows once at module init.
        pe_rows = prepare_pe_rows(pe_rows, B)
    assert pe_rows.shape[0] >= S, "PE buffer max_len must cover the sequence"
    pe_rows = pe_rows.astype(x.dtype)

    x2 = x.reshape(S, N)                                  # contiguous, free
    itemsize = jnp.dtype(x.dtype).itemsize
    TS = _pick_seq_tile(S, N * itemsize)
    grid = (pl.cdiv(S, TS),)

    dropout_active = training and p > 0.0
    streamed_bits = dropout_active and not use_inkernel_prng

    # Explicit VMEM budget: 2 buffers per stream (x, pe, out [+ bits]), floored
    # at the 32 MiB scoped default, capped at 48 MiB (fits v7x's 64 MiB VMEM,
    # well above v5e's 16 MiB scoped default).
    tile_bytes = TS * N * itemsize
    bits_bytes = TS * N * 4 if streamed_bits else 0
    working = 2 * (3 * tile_bytes + bits_bytes)
    vmem_limit = int(min(max(working + (4 << 20), 32 << 20), 48 << 20))

    cparams = pltpu.CompilerParams(
        dimension_semantics=("parallel",),
        vmem_limit_bytes=vmem_limit,
    )

    out_shape = jax.ShapeDtypeStruct((S, N), x.dtype)
    blk = lambda i: (i, 0)

    if not dropout_active:
        # nn.Dropout in eval mode (or p == 0) is the identity.
        out2 = pl.pallas_call(
            _add_pe_kernel,
            out_shape=out_shape,
            grid=grid,
            in_specs=[pl.BlockSpec((TS, N), blk), pl.BlockSpec((TS, N), blk)],
            out_specs=pl.BlockSpec((TS, N), blk),
            compiler_params=cparams,
        )(x2, pe_rows)
        return out2.reshape(S, B, D)

    if p >= 1.0:
        return jnp.zeros_like(x)

    if rng_key is None:
        rng_key = jax.random.PRNGKey(0)
    # NOTE: threshold/scale are trace-time constants -> one compile per distinct p.
    threshold = min(int(round((1.0 - p) * float(2 ** 32))), 2 ** 32 - 1)
    scale = 1.0 / (1.0 - p)

    if use_inkernel_prng:
        # Fast path: only a scalar seed crosses HBM; bits come from the TPU PRNG.
        seed = jax.random.randint(rng_key, (1,), minval=0,
                                  maxval=jnp.iinfo(jnp.int32).max, dtype=jnp.int32)
        kernel = _make_dropout_prng_kernel(threshold, scale)
        blk_p = lambda i, seed_ref: (i, 0)
        grid_spec = pltpu.PrefetchScalarGridSpec(
            num_scalar_prefetch=1,
            grid=grid,
            in_specs=[pl.BlockSpec((TS, N), blk_p), pl.BlockSpec((TS, N), blk_p)],
            out_specs=pl.BlockSpec((TS, N), blk_p),
        )
        out2 = pl.pallas_call(
            kernel, out_shape=out_shape, grid_spec=grid_spec,
            compiler_params=cparams,
        )(seed, x2, pe_rows)
    else:
        # Portable path (interpret/testing): stream pre-drawn uint32 bits.
        bits = jax.random.bits(rng_key, (S, N), dtype=jnp.uint32)
        kernel = _make_dropout_bits_kernel(threshold, scale)
        out2 = pl.pallas_call(
            kernel, out_shape=out_shape, grid=grid,
            in_specs=[pl.BlockSpec((TS, N), blk),
                      pl.BlockSpec((TS, N), blk),
                      pl.BlockSpec((TS, N), blk)],
            out_specs=pl.BlockSpec((TS, N), blk),
            compiler_params=cparams,
        )(x2, pe_rows, bits)

    return out2.reshape(S, B, D)


# -----------------------------------------------------------------------------
# Demo / self-check
# -----------------------------------------------------------------------------
if __name__ == "__main__":
    S, B, D = 8, 2, 32            # seq=8, batch=2, d_model=32 (even, as required)
    MAX_LEN = 250
    P_DROP = 0.1

    key = jax.random.PRNGKey(0)
    key_x, key_drop = jax.random.split(key)
    x = jax.random.normal(key_x, (S, B, D), dtype=jnp.float32)

    pe_buf = make_sincos_pe(D, MAX_LEN)        # (max_len, 1, D): the module's buffer
    pe_rows = prepare_pe_rows(pe_buf, B)       # one-time init: (max_len, B*D), lane-dense

    ref = x + pe_buf[:S]                       # broadcast over batch, like the module

    # ---- Eval mode (dropout = identity): exact match against plain JAX. -----
    out_eval = positional_encoding_sincos(x, pe_rows, p=P_DROP, training=False)
    out_eval = jax.block_until_ready(out_eval)
    assert out_eval.shape == (S, B, D)
    assert jnp.allclose(out_eval, ref, atol=1e-6, rtol=1e-6), "eval-mode mismatch"

    # ---- Training mode, portable streamed-bits path (bit-exact check). ------
    out_train = positional_encoding_sincos(x, pe_rows, p=P_DROP, training=True,
                                           rng_key=key_drop, use_inkernel_prng=False)
    out_train = jax.block_until_ready(out_train)
    assert out_train.shape == (S, B, D)
    bits_ref = jax.random.bits(key_drop, (S, B * D), dtype=jnp.uint32)
    threshold = min(int(round((1.0 - P_DROP) * float(2 ** 32))), 2 ** 32 - 1)
    keep_ref = (bits_ref < jnp.uint32(threshold)).reshape(S, B, D)
    expected = jnp.where(keep_ref, ref / (1.0 - P_DROP), 0.0)
    assert jnp.allclose(out_train, expected, atol=1e-5, rtol=1e-5), \
        "train-mode dropout mismatch"

    # ---- Training mode, in-kernel PRNG fast path (default on real TPU). -----
    # Kept values must equal scaled (x + pe); the mask itself is a different
    # (on-chip) RNG stream.  Skip gracefully if this execution environment
    # cannot lower pltpu.prng_* (e.g. generic interpret mode).
    try:
        out_fast = positional_encoding_sincos(x, pe_rows, p=P_DROP, training=True,
                                              rng_key=key_drop)
        out_fast = jax.block_until_ready(out_fast)
        assert out_fast.shape == (S, B, D)
        kept = out_fast != 0.0
        scaled_ref = ref / (1.0 - P_DROP)
        assert jnp.allclose(jnp.where(kept, out_fast, 0.0),
                            jnp.where(kept, scaled_ref, 0.0),
                            atol=1e-5, rtol=1e-5), "fast-path kept-value mismatch"
    except Exception:  # noqa: BLE001
        pass  # TODO(synk): fast path needs real-TPU lowering of pltpu.prng_*.

    print("KERNEL_OK")
</pallas_src>

<mosaic_0001>
module attributes {stable_mosaic.version = 11 : i64} {
  func.func @_add_pe_kernel(%arg0: i32, %arg1: memref<8x64xf32, #tpu.memory_space<vmem>>, %arg2: memref<8x64xf32, #tpu.memory_space<vmem>>, %arg3: memref<8x64xf32, #tpu.memory_space<vmem>>) attributes {dimension_semantics = [#tpu.dimension_semantics<parallel>], iteration_bounds = array<i64: 1>, scalar_prefetch = 0 : i64, scratch_operands = 0 : i64, tpu.core_type = #tpu.core_type<tc>, window_params = [{transform_indices = @transform_0, window_bounds = array<i64: 8, 64>}, {transform_indices = @transform_1, window_bounds = array<i64: 8, 64>}, {transform_indices = @transform_2, window_bounds = array<i64: 8, 64>}]} {
    %c0 = arith.constant 0 : index
    %c0_0 = arith.constant 0 : index
    %0 = vector.load %arg1[%c0, %c0_0] : memref<8x64xf32, #tpu.memory_space<vmem>>, vector<8x64xf32>
    %c0_1 = arith.constant 0 : index
    %c0_2 = arith.constant 0 : index
    %1 = vector.load %arg2[%c0_1, %c0_2] : memref<8x64xf32, #tpu.memory_space<vmem>>, vector<8x64xf32>
    %2 = arith.addf %0, %1 : vector<8x64xf32>
    %c0_3 = arith.constant 0 : index
    %c0_4 = arith.constant 0 : index
    %3 = vector.load %arg3[%c0_3, %c0_4] : memref<8x64xf32, #tpu.memory_space<vmem>>, vector<8x64xf32>
    tpu.vector_store %arg3[%c0_3, %c0_4], %2 {strides = array<i32>} : memref<8x64xf32, #tpu.memory_space<vmem>>, vector<8x64xf32>,
    return
  }
  func.func @transform_0(%arg0: i32) -> (i32, i32) {
    %c0_i32 = arith.constant 0 : i32
    %c0_i32_0 = arith.constant 0 : i32
    return %arg0, %c0_i32 : i32, i32
  }
  func.func @transform_1(%arg0: i32) -> (i32, i32) {
    %c0_i32 = arith.constant 0 : i32
    %c0_i32_0 = arith.constant 0 : i32
    return %arg0, %c0_i32 : i32, i32
  }
  func.func @transform_2(%arg0: i32) -> (i32, i32) {
    %c0_i32 = arith.constant 0 : i32
    %c0_i32_0 = arith.constant 0 : i32
    return %arg0, %c0_i32 : i32, i32
  }
}

</mosaic_0001>

<llo_original>
// kernel: tpu_custom_call.1
$region0: #{tpu_custom_call.1}
  #allocation0 [shape = 'u32[]', space=smem, size = 0x4, offset = 0x4, fixed_abs, tag = 'smem constant byte address 0x4 - core index']
  #allocation1 [shape = 'u32[72,128]{1,0:T(1,128)}', space=vmem, size = 0x9000, scoped, tag = 'internal scratch']
  %s0 = inlined_call_operand.vmem [shape: f32[8,64], index: 0, kind: input, shape index: {}]
  %s1 = inlined_call_operand.vmem [shape: f32[250,64], index: 1, kind: input, shape index: {}]
  %s2 = inlined_call_operand.hbm [shape: f32[8,64], index: 2, kind: output, shape index: {}]
  %s3 = sld [smem:[#allocation0]]
  $region18: #{tpu_custom_call.1} parent=0
    _
  %s5 = ssub.s32 1, %s3
  %s6 = scalar_select 0, %s5, %s3
  $region1: #{tpu_custom_call.1} parent=0
    #allocation2 [shape = 'u8[4096]{0}', space=vmem, size = 0x1000, scoped, tag = 'output window, operand 0, single buffered']
    #allocation3 [shape = 's32[1]{0}', space=sflag, size = 0x4, scoped, tag = 'scoped memory for tpu_custom_call.1']
    %7 = vsyncpa [#allocation3], 0
    // Predicated region
    $region2: #{tpu_custom_call.1} parent=1 // pred_check
      _
    $region3: #{tpu_custom_call.1} parent=1 // pred_check_branch
      %9 = sbr.rel (0) target = $region5
    $region4: #{tpu_custom_call.1} parent=1 // pred_region
      _
    $region5: #{tpu_custom_call.1} parent=1 // pred_fallthru
      _
    // Predicated region
    $region6: #{tpu_custom_call.1} parent=1 // pred_check
      _
    $region7: #{tpu_custom_call.1} parent=1 // pred_check_branch
      %11 = sbr.rel (0) target = $region9
    $region8: #{tpu_custom_call.1} parent=1 // pred_region
      _
    $region9: #{tpu_custom_call.1} parent=1 // pred_fallthru
      _
    %v12 = vld [vmem:[%s0] sm:$0xff]
    %v13 = vld [vmem:[%s1] sm:$0xff]
    %v14 = vadd.f32 %v12, %v13
    %vm15 = vcmask 523264
    %16 = vst.msk [vmem:[#allocation2] sm:$0xff] %vm15, %v14
    // Predicated region
    $region10: #{tpu_custom_call.1} parent=1 // pred_check
      _
    $region11: #{tpu_custom_call.1} parent=1 // pred_check_branch
      %18 = sbr.rel (0) target = $region13
    $region12: #{tpu_custom_call.1} parent=1 // pred_region
      %20 = vsyncadd [#allocation3], 0
      %s22 = sshll.u32 [#allocation2], 4
      %s23 = int_to_ptr.vmem [resolvable:$true] %s22
      %s24 = sshll.u32 %s2, 4
      %s25 = int_to_ptr.hbm [resolvable:$true] %s24
      %27 = dma.vmem_to_hbm [thread:$0]  %s23, 128, %s25, [#allocation3]
    $region13: #{tpu_custom_call.1} parent=1 // pred_fallthru
      _
    // Predicated region
    $region14: #{tpu_custom_call.1} parent=1 // pred_check
      _
    $region15: #{tpu_custom_call.1} parent=1 // pred_check_branch
      %29 = sbr.rel (0) target = $region17
    $region16: #{tpu_custom_call.1} parent=1 // pred_region
      %31 = dma.done [#allocation3], 128
    $region17: #{tpu_custom_call.1} parent=1 // pred_fallthru
      _
    %32 = vsyncpa [#allocation3], 1

</llo_original>
